<compile_context>
chip_gen: v7x
topology: tpu7x:2x2x1
jax: 0.10.0
libtpu: 0.0.40
codegen_flags: <defaults>
</compile_context>

<pallas_src>
import numpy as np
import jax
import jax.numpy as jnp
from jax.experimental import pallas as pl
from jax.experimental.pallas import tpu as pltpu

EPS = 1e-6                       # module __init__ default
_SUBLANE = {4: 8, 2: 16, 1: 32}  # min second-to-last tile rows per itemsize


def _round_up(a, b):
    return (a + b - 1) // b * b


def _make_kernel(tile_rows, d, rows_total, grid, in_dtype):
    groups = tile_rows // 8
    ragged = (rows_total % tile_rows) != 0
    valid_last = rows_total - (grid - 1) * tile_rows   # valid rows in last tile

    def kernel(x_ref, y_ref, num_ref, den_ref):
        x = x_ref[...]
        y = y_ref[...]
        if in_dtype != jnp.float32:           # static: skip cast for f32 inputs
            x = x.astype(jnp.float32)
            y = y.astype(jnp.float32)
        ax = jnp.abs(x)
        ay = jnp.abs(y)
        # "Signal intersection": where the two signals agree in sign take the
        # smaller magnitude, else contribute nothing.
        # TODO(synk): x*y > 0 gating assumed; use an explicit sign comparison if
        # bit-parity with a sign()-based torch implementation is required.
        inter = jnp.where(x * y > 0.0, jnp.minimum(ax, ay), 0.0)
        den = ax + ay

        def emit(num_vals, den_vals):
            # Collapse rows to one (8, D) slab with pure VPU adds (the reshape
            # only splits the major dim -> free view, no XLU reduce, and the
            # (8, D) store is sublane-aligned / unmasked).
            num_ref[0] = jnp.sum(num_vals.reshape(groups, 8, d), axis=0)
            den_ref[0] = jnp.sum(den_vals.reshape(groups, 8, d), axis=0)

        if not ragged:
            emit(inter, den)
        else:
            i = pl.program_id(0)

            @pl.when(i != grid - 1)
            def _():
                emit(inter, den)

            @pl.when(i == grid - 1)
            def _():
                # The last block overhangs `rows_total`; overhang rows hold
                # unspecified data -> select them to 0 for both partials
                # (select, not multiply, so NaN garbage cannot leak through).
                row_ids = jax.lax.broadcasted_iota(jnp.int32, (tile_rows, d), 0)
                mask = row_ids < valid_last
                emit(jnp.where(mask, inter, 0.0), jnp.where(mask, den, 0.0))

    return kernel


def signal_dice_loss(inputs, targets, eps=EPS, target_block_bytes=2 * 1024 * 1024):
    """Pallas version of SignalDiceLoss.forward: 1 - SDSC(inputs, targets)."""
    assert inputs.shape == targets.shape, (inputs.shape, targets.shape)
    if inputs.ndim < 2:
        x2 = inputs.reshape(1, -1)
        y2 = targets.reshape(1, -1)
    else:
        # Collapsing leading dims keeps the minor dim -> no data movement.
        x2 = inputs.reshape(-1, inputs.shape[-1])
        y2 = targets.reshape(-1, targets.shape[-1])
    rows, d = x2.shape
    itemsize = jnp.dtype(x2.dtype).itemsize
    sub = _SUBLANE.get(itemsize, 8)

    # Rows per grid step: ~target_block_bytes per input block (so per-step DMA
    # dwarfs the ~0.35us grid-step overhead), capped so grid >= 2 whenever
    # possible (v7x megacore gets both TensorCores working).
    bytes_per_row = max(d * itemsize, 1)
    tile = max(sub, (target_block_bytes // bytes_per_row) // sub * sub)
    tile = min(tile, max(_round_up((rows + 1) // 2, sub), sub))
    grid = (rows + tile - 1) // tile

    kernel = _make_kernel(tile, d, rows, grid, x2.dtype)

    num_p, den_p = pl.pallas_call(
        kernel,
        out_shape=(
            jax.ShapeDtypeStruct((grid, 8, d), jnp.float32),
            jax.ShapeDtypeStruct((grid, 8, d), jnp.float32),
        ),
        grid=(grid,),
        in_specs=[
            pl.BlockSpec((tile, d), lambda i: (i, 0)),
            pl.BlockSpec((tile, d), lambda i: (i, 0)),
        ],
        out_specs=(
            pl.BlockSpec((1, 8, d), lambda i: (i, 0, 0)),
            pl.BlockSpec((1, 8, d), lambda i: (i, 0, 0)),
        ),
        compiler_params=pltpu.CompilerParams(
            dimension_semantics=("parallel",)),
    )(x2, y2)

    # Scalar glue in plain JAX (tiny: 2 x (grid, 8, D) -> 2 scalars).
    num = jnp.sum(num_p)
    den = jnp.sum(den_p)
    sdsc = 2.0 * num / (den + eps)
    return 1.0 - sdsc


def _signal_dice_loss_ref(x, y, eps=EPS):
    """Pure numpy reference (float64)."""
    x = np.asarray(x, np.float64)
    y = np.asarray(y, np.float64)
    inter = np.where(x * y > 0.0, np.minimum(np.abs(x), np.abs(y)), 0.0).sum()
    den = np.abs(x).sum() + np.abs(y).sum()
    sdsc = 2.0 * inter / (den + eps)
    return 1.0 - sdsc


if __name__ == "__main__":
    key = jax.random.PRNGKey(0)

    # (batch, channels, seq_len) signals.  Case 1 exercises a ragged last row
    # tile (35 rows over tile=24) and a non-multiple-of-128 lane dim (176);
    # case 2 is the clean tile-divisible / 128-lane path.
    for shape in [(5, 7, 176), (4, 8, 128)]:
        kx, ky, key = jax.random.split(key, 3)
        inputs = jax.random.normal(kx, shape, dtype=jnp.float32)
        targets = jax.random.normal(ky, shape, dtype=jnp.float32)

        loss = signal_dice_loss(inputs, targets)
        jax.block_until_ready(loss)

        ref = _signal_dice_loss_ref(np.asarray(inputs), np.asarray(targets))
        assert np.allclose(float(loss), ref, rtol=1e-5, atol=1e-6), (shape, float(loss), ref)

    print("KERNEL_OK")
</pallas_src>

<mosaic_0001>
module attributes {stable_mosaic.version = 11 : i64} {
  func.func @kernel(%arg0: i32, %arg1: memref<24x176xf32, #tpu.memory_space<vmem>>, %arg2: memref<24x176xf32, #tpu.memory_space<vmem>>, %arg3: memref<1x8x176xf32, #tpu.memory_space<vmem>>, %arg4: memref<1x8x176xf32, #tpu.memory_space<vmem>>) attributes {dimension_semantics = [#tpu.dimension_semantics<parallel>], iteration_bounds = array<i64: 2>, scalar_prefetch = 0 : i64, scratch_operands = 0 : i64, tpu.core_type = #tpu.core_type<tc>, window_params = [{transform_indices = @transform_0, window_bounds = array<i64: 24, 176>}, {transform_indices = @transform_1, window_bounds = array<i64: 24, 176>}, {transform_indices = @transform_2, window_bounds = array<i64: 1, 8, 176>}, {transform_indices = @transform_3, window_bounds = array<i64: 1, 8, 176>}]} {
    %c0 = arith.constant 0 : index
    %c0_0 = arith.constant 0 : index
    %0 = vector.load %arg1[%c0, %c0_0] : memref<24x176xf32, #tpu.memory_space<vmem>>, vector<24x176xf32>
    %c0_1 = arith.constant 0 : index
    %c0_2 = arith.constant 0 : index
    %1 = vector.load %arg2[%c0_1, %c0_2] : memref<24x176xf32, #tpu.memory_space<vmem>>, vector<24x176xf32>
    %2 = math.absf %0 : vector<24x176xf32>
    %3 = math.absf %1 : vector<24x176xf32>
    %4 = arith.mulf %0, %1 : vector<24x176xf32>
    %cst = arith.constant 0.000000e+00 : f32
    %5 = vector.broadcast %cst : f32 to vector<24x176xf32>
    %6 = arith.cmpf ogt, %4, %5 : vector<24x176xf32>
    %7 = arith.minimumf %2, %3 : vector<24x176xf32>
    %cst_3 = arith.constant 0.000000e+00 : f32
    %8 = vector.broadcast %cst_3 : f32 to vector<24x176xf32>
    %9 = arith.select %6, %7, %8 : vector<24x176xi1>, vector<24x176xf32>
    %10 = arith.addf %2, %3 : vector<24x176xf32>
    %c1_i32 = arith.constant 1 : i32
    %11 = arith.cmpi ne, %arg0, %c1_i32 : i32
    %12 = arith.extui %11 : i1 to i32
    %c0_i32 = arith.constant 0 : i32
    %13 = arith.cmpi ne, %12, %c0_i32 : i32
    scf.if %13 {
      %17 = vector.shape_cast %9 : vector<24x176xf32> to vector<3x8x176xf32>
      %cst_6 = arith.constant dense<0.000000e+00> : vector<8x176xf32>
      %18 = vector.multi_reduction <add>, %17, %cst_6 [0] : vector<3x8x176xf32> to vector<8x176xf32>
      %c0_7 = arith.constant 0 : index
      %c0_8 = arith.constant 0 : index
      %c0_9 = arith.constant 0 : index
      %19 = vector.load %arg3[%c0_7, %c0_8, %c0_9] : memref<1x8x176xf32, #tpu.memory_space<vmem>>, vector<1x8x176xf32>
      %20 = vector.shape_cast %19 : vector<1x8x176xf32> to vector<8x176xf32>
      %21 = vector.shape_cast %18 : vector<8x176xf32> to vector<1x8x176xf32>
      tpu.vector_store %arg3[%c0_7, %c0_8, %c0_9], %21 {strides = array<i32>} : memref<1x8x176xf32, #tpu.memory_space<vmem>>, vector<1x8x176xf32>,
      %22 = vector.shape_cast %10 : vector<24x176xf32> to vector<3x8x176xf32>
      %cst_10 = arith.constant dense<0.000000e+00> : vector<8x176xf32>
      %23 = vector.multi_reduction <add>, %22, %cst_10 [0] : vector<3x8x176xf32> to vector<8x176xf32>
      %c0_11 = arith.constant 0 : index
      %c0_12 = arith.constant 0 : index
      %c0_13 = arith.constant 0 : index
      %24 = vector.load %arg4[%c0_11, %c0_12, %c0_13] : memref<1x8x176xf32, #tpu.memory_space<vmem>>, vector<1x8x176xf32>
      %25 = vector.shape_cast %24 : vector<1x8x176xf32> to vector<8x176xf32>
      %26 = vector.shape_cast %23 : vector<8x176xf32> to vector<1x8x176xf32>
      tpu.vector_store %arg4[%c0_11, %c0_12, %c0_13], %26 {strides = array<i32>} : memref<1x8x176xf32, #tpu.memory_space<vmem>>, vector<1x8x176xf32>,
    } else {
    }
    %c1_i32_4 = arith.constant 1 : i32
    %14 = arith.cmpi eq, %arg0, %c1_i32_4 : i32
    %15 = arith.extui %14 : i1 to i32
    %c0_i32_5 = arith.constant 0 : i32
    %16 = arith.cmpi ne, %15, %c0_i32_5 : i32
    scf.if %16 {
      %17 = tpu.iota {dimensions = array<i32: 0>} : vector<24x176xi32>
      %c11_i32 = arith.constant 11 : i32
      %18 = vector.broadcast %c11_i32 : i32 to vector<24x176xi32>
      %19 = arith.cmpi slt, %17, %18 : vector<24x176xi32>
      %cst_6 = arith.constant 0.000000e+00 : f32
      %20 = vector.broadcast %cst_6 : f32 to vector<24x176xf32>
      %21 = arith.select %19, %9, %20 : vector<24x176xi1>, vector<24x176xf32>
      %cst_7 = arith.constant 0.000000e+00 : f32
      %22 = vector.broadcast %cst_7 : f32 to vector<24x176xf32>
      %23 = arith.select %19, %10, %22 : vector<24x176xi1>, vector<24x176xf32>
      %24 = vector.shape_cast %21 : vector<24x176xf32> to vector<3x8x176xf32>
      %cst_8 = arith.constant dense<0.000000e+00> : vector<8x176xf32>
      %25 = vector.multi_reduction <add>, %24, %cst_8 [0] : vector<3x8x176xf32> to vector<8x176xf32>
      %c0_9 = arith.constant 0 : index
      %c0_10 = arith.constant 0 : index
      %c0_11 = arith.constant 0 : index
      %26 = vector.load %arg3[%c0_9, %c0_10, %c0_11] : memref<1x8x176xf32, #tpu.memory_space<vmem>>, vector<1x8x176xf32>
      %27 = vector.shape_cast %26 : vector<1x8x176xf32> to vector<8x176xf32>
      %28 = vector.shape_cast %25 : vector<8x176xf32> to vector<1x8x176xf32>
      tpu.vector_store %arg3[%c0_9, %c0_10, %c0_11], %28 {strides = array<i32>} : memref<1x8x176xf32, #tpu.memory_space<vmem>>, vector<1x8x176xf32>,
      %29 = vector.shape_cast %23 : vector<24x176xf32> to vector<3x8x176xf32>
      %cst_12 = arith.constant dense<0.000000e+00> : vector<8x176xf32>
      %30 = vector.multi_reduction <add>, %29, %cst_12 [0] : vector<3x8x176xf32> to vector<8x176xf32>
      %c0_13 = arith.constant 0 : index
      %c0_14 = arith.constant 0 : index
      %c0_15 = arith.constant 0 : index
      %31 = vector.load %arg4[%c0_13, %c0_14, %c0_15] : memref<1x8x176xf32, #tpu.memory_space<vmem>>, vector<1x8x176xf32>
      %32 = vector.shape_cast %31 : vector<1x8x176xf32> to vector<8x176xf32>
      %33 = vector.shape_cast %30 : vector<8x176xf32> to vector<1x8x176xf32>
      tpu.vector_store %arg4[%c0_13, %c0_14, %c0_15], %33 {strides = array<i32>} : memref<1x8x176xf32, #tpu.memory_space<vmem>>, vector<1x8x176xf32>,
    } else {
    }
    return
  }
  func.func @transform_0(%arg0: i32) -> (i32, i32) {
    %c0_i32 = arith.constant 0 : i32
    %c0_i32_0 = arith.constant 0 : i32
    return %arg0, %c0_i32 : i32, i32
  }
  func.func @transform_1(%arg0: i32) -> (i32, i32) {
    %c0_i32 = arith.constant 0 : i32
    %c0_i32_0 = arith.constant 0 : i32
    return %arg0, %c0_i32 : i32, i32
  }
  func.func @transform_2(%arg0: i32) -> (i32, i32, i32) {
    %c0_i32 = arith.constant 0 : i32
    %c0_i32_0 = arith.constant 0 : i32
    %c0_i32_1 = arith.constant 0 : i32
    return %arg0, %c0_i32, %c0_i32_0 : i32, i32, i32
  }
  func.func @transform_3(%arg0: i32) -> (i32, i32, i32) {
    %c0_i32 = arith.constant 0 : i32
    %c0_i32_0 = arith.constant 0 : i32
    %c0_i32_1 = arith.constant 0 : i32
    return %arg0, %c0_i32, %c0_i32_0 : i32, i32, i32
  }
}

</mosaic_0001>

<llo_original>
// kernel: tpu_custom_call.1
$region0: #{tpu_custom_call.1}
  #allocation0 [shape = 'u32[]', space=smem, size = 0x4, offset = 0x4, fixed_abs, tag = 'smem constant byte address 0x4 - core index']
  #allocation1 [shape = 'u32[144,128]{1,0:T(1,128)}', space=vmem, size = 0x12000, scoped, tag = 'internal scratch']
  %s0 = inlined_call_operand.hbm [shape: f32[35,176], index: 0, kind: input, shape index: {}]
  %s1 = inlined_call_operand.hbm [shape: f32[35,176], index: 1, kind: input, shape index: {}]
  %s2 = inlined_call_operand.hbm [shape: f32[2,8,176], index: 2, kind: output, shape index: {0}]
  %s3 = inlined_call_operand.hbm [shape: f32[2,8,176], index: 3, kind: output, shape index: {1}]
  %4 = xla_tuple %s2, %s3
  %s5 = sld [smem:[#allocation0]]
  $region65: #{tpu_custom_call.1} parent=0
    _
  %s7 = ssub.s32 1, %s5
  %s8 = scalar_select 0, %s7, %s5
  $region1: #{tpu_custom_call.1} parent=0
    #allocation2 [shape = 'u8[49152]{0}', space=vmem, size = 0xc000, scoped, tag = 'input window, operand 0']
    #allocation3 [shape = 's32[2]{0}', space=sflag, size = 0x8, scoped, tag = 'scoped memory for tpu_custom_call.1']
    #allocation4 [shape = 's32[2]{0}', space=sflag, size = 0x8, scoped, tag = 'scoped memory for tpu_custom_call.1']
    #allocation5 [shape = 'u8[49152]{0}', space=vmem, size = 0xc000, scoped, tag = 'input window, operand 1']
    #allocation6 [shape = 's32[2]{0}', space=sflag, size = 0x8, scoped, tag = 'scoped memory for tpu_custom_call.1']
    #allocation7 [shape = 'u8[16384]{0}', space=vmem, size = 0x4000, scoped, tag = 'output window, operand 0']
    #allocation8 [shape = 'u8[16384]{0}', space=vmem, size = 0x4000, scoped, tag = 'output window, operand 1']
    #allocation9 [shape = 's32[2]{0}', space=sflag, size = 0x8, scoped, tag = 'scoped memory for tpu_custom_call.1']
    %9 = vsyncpa [#allocation3], 0
    %s10 = scalar_lea.sflag [#allocation3], 1
    %11 = vsyncpa %s10, 0
    %12 = vsyncpa [#allocation6], 0
    %s13 = scalar_lea.sflag [#allocation6], 1
    %14 = vsyncpa %s13, 0
    %15 = vsyncpa [#allocation4], 0
    %s16 = scalar_lea.sflag [#allocation4], 1
    %17 = vsyncpa %s16, 0
    %18 = vsyncpa [#allocation9], 0
    %s19 = scalar_lea.sflag [#allocation9], 1
    %20 = vsyncpa %s19, 0
    loop: start=0, step=1, limit=4
    $region2: #{tpu_custom_call.1} parent=1 // loop_pre_header
      _
    $region3: #{tpu_custom_call.1} parent=1 // loop_header
      %s22 = sphi 0, %s26
      %p23 = scmp.ge.s32.totalorder %s22, 4
      %s32 = sphi 0, %s34
      %s35 = sphi 0, %s32
      %s36 = sphi 0, %s35
      %s52 = sphi 0, %s36
      %s58 = sphi 0, %s60
      %s61 = sphi 0, %s58
      %s62 = sphi 0, %s61
      %s78 = sphi 0, %s62
      %s84 = sphi 0, %s86
      %s87 = sphi 0, %s84
      %s88 = sphi 0, %s87
      %s104 = sphi 0, %s88
      %s110 = sphi 0, %s112
      %s113 = sphi 0, %s110
      %s114 = sphi 0, %s113
      %s130 = sphi 0, %s114
    $region4: #{tpu_custom_call.1} parent=1 // loop_header_branch
      %25 = sbr.rel (%p23) target = $region8
    $region5: #{tpu_custom_call.1} parent=1 // loop_body
      %s27 = ssub.s32 %s22, 1
      %s28 = ssub.s32 %s22, 2
      %s29 = sadd.s32 %s22, 1
      %s30 = ssub.s32 %s22, %s29
      %p31 = scmp.eq.s32.totalorder %s30, 0
      %s33 = sadd.s32 %s32, 1
      %s34 = scalar_select %p31, %s32, %s33
      %p37 = pneg %p31
      %p38 = scmp.eq.s32.totalorder %s22, 1
      %p39 = por %p37, %p38
      %p40 = scmp.ne.s32.totalorder %s32, %s35
      %p41 = scmp.eq.s32.totalorder %s22, 0
      %p42 = por %p40, %p41
      %p43 = scmp.ne.s32.totalorder %s32, %s35
      %p44 = scmp.eq.s32.totalorder %s27, 1
      %p45 = por %p43, %p44
      %p46 = scmp.ne.s32.totalorder %s35, %s36
      %p47 = scmp.eq.s32.totalorder %s27, 0
      %p48 = por %p46, %p47
      %p49 = scmp.ne.s32.totalorder %s35, %s36
      %p50 = scmp.eq.s32.totalorder %s28, 1
      %p51 = por %p49, %p50
      %p53 = scmp.ne.s32.totalorder %s36, %s52
      %p54 = scmp.eq.s32.totalorder %s28, 0
      %p55 = por %p53, %p54
      %s56 = ssub.s32 %s22, %s29
      %p57 = scmp.eq.s32.totalorder %s56, 0
      %s59 = sadd.s32 %s58, 1
      %s60 = scalar_select %p57, %s58, %s59
      %p63 = pneg %p57
      %p64 = scmp.eq.s32.totalorder %s22, 1
      %p65 = por %p63, %p64
      %p66 = scmp.ne.s32.totalorder %s58, %s61
      %p67 = scmp.eq.s32.totalorder %s22, 0
      %p68 = por %p66, %p67
      %p69 = scmp.ne.s32.totalorder %s58, %s61
      %p70 = scmp.eq.s32.totalorder %s27, 1
      %p71 = por %p69, %p70
      %p72 = scmp.ne.s32.totalorder %s61, %s62
      %p73 = scmp.eq.s32.totalorder %s27, 0
      %p74 = por %p72, %p73
      %p75 = scmp.ne.s32.totalorder %s61, %s62
      %p76 = scmp.eq.s32.totalorder %s28, 1
      %p77 = por %p75, %p76
      %p79 = scmp.ne.s32.totalorder %s62, %s78
      %p80 = scmp.eq.s32.totalorder %s28, 0
      %p81 = por %p79, %p80
      %s82 = ssub.s32 %s22, %s29
      %p83 = scmp.eq.s32.totalorder %s82, 0
      %s85 = sadd.s32 %s84, 1
      %s86 = scalar_select %p83, %s84, %s85
      %p89 = pneg %p83
      %p90 = scmp.eq.s32.totalorder %s22, 1
      %p91 = por %p89, %p90
      %p92 = scmp.ne.s32.totalorder %s84, %s87
      %p93 = scmp.eq.s32.totalorder %s22, 0
      %p94 = por %p92, %p93
      %p95 = scmp.ne.s32.totalorder %s84, %s87
      %p96 = scmp.eq.s32.totalorder %s27, 1
      %p97 = por %p95, %p96
      %p98 = scmp.ne.s32.totalorder %s87, %s88
      %p99 = scmp.eq.s32.totalorder %s27, 0
      %p100 = por %p98, %p99
      %p101 = scmp.ne.s32.totalorder %s87, %s88
      %p102 = scmp.eq.s32.totalorder %s28, 1
      %p103 = por %p101, %p102
      %p105 = scmp.ne.s32.totalorder %s88, %s104
      %p106 = scmp.eq.s32.totalorder %s28, 0
      %p107 = por %p105, %p106
      %s108 = ssub.s32 %s22, %s29
      %p109 = scmp.eq.s32.totalorder %s108, 0
      %s111 = sadd.s32 %s110, 1
      %s112 = scalar_select %p109, %s110, %s111
      %p115 = pneg %p109
      %p116 = scmp.eq.s32.totalorder %s22, 1
      %p117 = por %p115, %p116
      %p118 = scmp.ne.s32.totalorder %s110, %s113
      %p119 = scmp.eq.s32.totalorder %s22, 0
      %p120 = por %p118, %p119
      %p121 = scmp.ne.s32.totalorder %s110, %s113
      %p122 = scmp.eq.s32.totalorder %s27, 1
      %p123 = por %p121, %p122
      %p124 = scmp.ne.s32.totalorder %s113, %s114
      %p125 = scmp.eq.s32.totalorder %s27, 0
      %p126 = por %p124, %p125
      %p127 = scmp.ne.s32.totalorder %s113, %s114
      %p128 = scmp.eq.s32.totalorder %s28, 1
      %p129 = por %p127, %p128
      %p131 = scmp.ne.s32.totalorder %s114, %s130
      %p132 = scmp.eq.s32.totalorder %s28, 0
      %p133 = por %p131, %p132
      %p134 = scmp.le.s32.totalorder 1, %s22
      %p135 = scmp.lt.s32.totalorder %s22, 3
      %p136 = pnand %p134, %p135
      %p137 = pneg %p136
      // Predicated region
      $region9: #{tpu_custom_call.1} parent=5 // pred_check
        _
      $region10: #{tpu_custom_call.1} parent=5 // pred_check_branch
        %139 = sbr.rel (%p136) target = $region12
      $region11: #{tpu_custom_call.1} parent=5 // pred_region
        %s140 = ssub.s32 %s22, 1
      $region12: #{tpu_custom_call.1} parent=5 // pred_fallthru
        _
      %p141 = scmp.lt.s32.totalorder %s22, 2
      // Predicated region
      $region13: #{tpu_custom_call.1} parent=5 // pred_check
        %p142 = pneg %p141
      $region14: #{tpu_custom_call.1} parent=5 // pred_check_branch
        %144 = sbr.rel (%p142) target = $region16
      $region15: #{tpu_custom_call.1} parent=5 // pred_region
        // Predicated region
        $region17: #{tpu_custom_call.1} parent=15 // pred_check
          %p145 = pneg %p42
        $region18: #{tpu_custom_call.1} parent=15 // pred_check_branch
          %147 = sbr.rel (%p145) target = $region20
        $region19: #{tpu_custom_call.1} parent=15 // pred_region
          %s148 = sand.u32 %s32, 1
          %s149 = scalar_lea.sflag [#allocation3], %s148
          %s150 = sand.u32 %s32, 1
          %s151 = smul.addr %s150, 48
          %s152 = scalar_lea.vmem [#allocation2], %s151
          %s153 = smul.u32 3, %s22
          %s154 = ssub.s32 5, %s153
          %p155 = scmp.lt.s32.totalorder %s154, 3
          %s156 = scalar_select %p155, %s154, 3
          %s157 = smul.u32 128, %s156
          %s158 = smul.u32 %s157, 2
          %s160 = ssub.s32 768, %s158
          %161 = vsyncadd %s149, %s160
          %p162 = scmp.ne.s32.totalorder 0, %s158
          %s163 = smul.addr %s153, 2
          %s164 = smul.addr %s163, 128
          %s165 = scalar_lea.hbm %s0, %s164
          %s166 = smul.u32 16, %s156
          %s167 = sshll.u32 %s152, 4
          %s168 = int_to_ptr.vmem [resolvable:$true] %s167
          %s169 = sshll.u32 %s166, 4
          %173 = dma.hbm_to_vmem [thread:$0]  (%p162), %s165, %s169, %s168, %s149, 256, 256, 16
        $region20: #{tpu_custom_call.1} parent=15 // pred_fallthru
          _
        // Predicated region
        $region21: #{tpu_custom_call.1} parent=15 // pred_check
          %p174 = pneg %p68
        $region22: #{tpu_custom_call.1} parent=15 // pred_check_branch
          %176 = sbr.rel (%p174) target = $region24
        $region23: #{tpu_custom_call.1} parent=15 // pred_region
          %s177 = sand.u32 %s58, 1
          %s178 = scalar_lea.sflag [#allocation6], %s177
          %s179 = sand.u32 %s58, 1
          %s180 = smul.addr %s179, 48
          %s181 = scalar_lea.vmem [#allocation5], %s180
          %s182 = smul.u32 3, %s22
          %s183 = ssub.s32 5, %s182
          %p184 = scmp.lt.s32.totalorder %s183, 3
          %s185 = scalar_select %p184, %s183, 3
          %s186 = smul.u32 128, %s185
          %s187 = smul.u32 %s186, 2
          %s189 = ssub.s32 768, %s187
          %190 = vsyncadd %s178, %s189
          %p191 = scmp.ne.s32.totalorder 0, %s187
          %s192 = smul.addr %s182, 2
          %s193 = smul.addr %s192, 128
          %s194 = scalar_lea.hbm %s1, %s193
          %s195 = smul.u32 16, %s185
          %s196 = sshll.u32 %s181, 4
          %s197 = int_to_ptr.vmem [resolvable:$true] %s196
          %s198 = sshll.u32 %s195, 4
          %202 = dma.hbm_to_vmem [thread:$0]  (%p191), %s194, %s198, %s197, %s178, 256, 256, 16
        $region24: #{tpu_custom_call.1} parent=15 // pred_fallthru
          _
      $region16: #{tpu_custom_call.1} parent=5 // pred_fallthru
        _
      %p203 = scmp.le.s32.totalorder 1, %s22
      %p204 = scmp.lt.s32.totalorder %s22, 3
      %p205 = pnand %p203, %p204
      %p206 = pneg %p205
      // Predicated region
      $region25: #{tpu_custom_call.1} parent=5 // pred_check
        _
      $region26: #{tpu_custom_call.1} parent=5 // pred_check_branch
        %208 = sbr.rel (%p205) target = $region28
      $region27: #{tpu_custom_call.1} parent=5 // pred_region
        %s209 = ssub.s32 %s22, 1
        %s210 = sand.u32 %s35, 1
        %s211 = scalar_lea.sflag [#allocation3], %s210
        %s212 = sand.u32 %s35, 1
        %s213 = smul.addr %s212, 48
        %s214 = scalar_lea.vmem [#allocation2], %s213
        // Predicated region
        $region29: #{tpu_custom_call.1} parent=27 // pred_check
          %p215 = pneg %p48
        $region30: #{tpu_custom_call.1} parent=27 // pred_check_branch
          %217 = sbr.rel (%p215) target = $region32
        $region31: #{tpu_custom_call.1} parent=27 // pred_region
          %218 = dma.done %s211, 768
        $region32: #{tpu_custom_call.1} parent=27 // pred_fallthru
          _
        %s219 = sand.u32 %s61, 1
        %s220 = scalar_lea.sflag [#allocation6], %s219
        %s221 = sand.u32 %s61, 1
        %s222 = smul.addr %s221, 48
        %s223 = scalar_lea.vmem [#allocation5], %s222
        // Predicated region
        $region33: #{tpu_custom_call.1} parent=27 // pred_check
          %p224 = pneg %p74
        $region34: #{tpu_custom_call.1} parent=27 // pred_check_branch
          %226 = sbr.rel (%p224) target = $region36
        $region35: #{tpu_custom_call.1} parent=27 // pred_region
          %227 = dma.done %s220, 768
        $region36: #{tpu_custom_call.1} parent=27 // pred_fallthru
          _
        %s228 = sand.u32 %s35, 1
        %s229 = scalar_lea.sflag [#allocation3], %s228
        %s230 = sand.u32 %s35, 1
        %s231 = smul.addr %s230, 48
        %s232 = scalar_lea.vmem [#allocation2], %s231
        %p233 = pneg %p48
        %p234 = pneg %p45
        %s235 = sand.u32 %s61, 1
        %s236 = scalar_lea.sflag [#allocation6], %s235
        %s237 = sand.u32 %s61, 1
        %s238 = smul.addr %s237, 48
        %s239 = scalar_lea.vmem [#allocation5], %s238
        %p240 = pneg %p74
        %p241 = pneg %p71
        %p242 = pneg %p100
        %p243 = pneg %p97
        %s244 = sand.u32 %s87, 1
        %s245 = scalar_lea.sflag [#allocation4], %s244
        %s246 = sand.u32 %s87, 1
        %s247 = smul.addr %s246, 16
        %s248 = scalar_lea.vmem [#allocation7], %s247
        %p249 = pneg %p126
        %p250 = pneg %p123
        %s251 = sand.u32 %s113, 1
        %s252 = scalar_lea.sflag [#allocation9], %s251
        %s253 = sand.u32 %s113, 1
        %s254 = smul.addr %s253, 16
        %s255 = scalar_lea.vmem [#allocation8], %s254
        %s256 = smul.u32 3, %s27
        %s257 = ssub.s32 5, %s256
        %p258 = scmp.lt.s32.totalorder %s257, 3
        %s259 = scalar_select %p258, %s257, 3
        %s260 = smul.u32 128, %s259
        %s261 = smul.u32 %s260, 2
        %s262 = smul.u32 3, %s27
        %s263 = ssub.s32 5, %s262
        %p264 = scmp.lt.s32.totalorder %s263, 3
        %s265 = scalar_select %p264, %s263, 3
        %s266 = smul.u32 128, %s265
        %s267 = smul.u32 %s266, 2
        %v268 = vld [vmem:[%s214] sm:$0xff]
        %v269 = vld [vmem:[%s214 + $0x8] sm:$0xff]
        %v270 = vld [vmem:[%s214 + $0x10] sm:$0xff]
        %v271 = vld [vmem:[%s214 + $0x18] sm:$0xff]
        %v272 = vld [vmem:[%s214 + $0x20] sm:$0xff]
        %v273 = vld [vmem:[%s214 + $0x28] sm:$0xff]
        %v274 = vld [vmem:[%s223] sm:$0xff]
        %v275 = vld [vmem:[%s223 + $0x8] sm:$0xff]
        %v276 = vld [vmem:[%s223 + $0x10] sm:$0xff]
        %v277 = vld [vmem:[%s223 + $0x18] sm:$0xff]
        %v278 = vld [vmem:[%s223 + $0x20] sm:$0xff]
        %v279 = vld [vmem:[%s223 + $0x28] sm:$0xff]
        %v280 = vand.u32 2147483647, %v268
        %v281 = vand.u32 2147483647, %v269
        %v282 = vand.u32 2147483647, %v270
        %v283 = vand.u32 2147483647, %v271
        %v284 = vand.u32 2147483647, %v272
        %v285 = vand.u32 2147483647, %v273
        %v286 = vand.u32 2147483647, %v274
        %v287 = vand.u32 2147483647, %v275
        %v288 = vand.u32 2147483647, %v276
        %v289 = vand.u32 2147483647, %v277
        %v290 = vand.u32 2147483647, %v278
        %v291 = vand.u32 2147483647, %v279
        %v292 = vmul.f32 %v268, %v274
        %v293 = vmul.f32 %v269, %v275
        %v294 = vmul.f32 %v270, %v276
        %v295 = vmul.f32 %v271, %v277
        %v296 = vmul.f32 %v272, %v278
        %v297 = vmul.f32 %v273, %v279
        %vm298 = vcmp.gt.f32.partialorder %v292, 0.0
        %vm299 = vcmp.gt.f32.partialorder %v293, 0.0
        %vm300 = vcmp.gt.f32.partialorder %v294, 0.0
        %vm301 = vcmp.gt.f32.partialorder %v295, 0.0
        %vm302 = vcmp.gt.f32.partialorder %v296, 0.0
        %vm303 = vcmp.gt.f32.partialorder %v297, 0.0
        %v304 = vmin.f32 %v280, %v286
        %v305 = vmin.f32 %v281, %v287
        %v306 = vmin.f32 %v282, %v288
        %v307 = vmin.f32 %v283, %v289
        %v308 = vmin.f32 %v284, %v290
        %v309 = vmin.f32 %v285, %v291
        %v310 = vsel %vm298, %v304, 0.0
        %v311 = vsel %vm299, %v305, 0.0
        %v312 = vsel %vm300, %v306, 0.0
        %v313 = vsel %vm301, %v307, 0.0
        %v314 = vsel %vm302, %v308, 0.0
        %v315 = vsel %vm303, %v309, 0.0
        %v316 = vadd.f32 %v280, %v286
        %v317 = vadd.f32 %v281, %v287
        %v318 = vadd.f32 %v282, %v288
        %v319 = vadd.f32 %v283, %v289
        %v320 = vadd.f32 %v284, %v290
        %v321 = vadd.f32 %v285, %v291
        %p322 = scmp.ne.s32.totalorder %s27, 1
        // Predicated region
        $region37: #{tpu_custom_call.1} parent=27 // pred_check
          %p323 = pneg %p322
        $region38: #{tpu_custom_call.1} parent=27 // pred_check_branch
          %325 = sbr.rel (%p323) target = $region40
        $region39: #{tpu_custom_call.1} parent=27 // pred_region
          %v326 = vadd.f32 %v310, %v312
          %v327 = vadd.f32 %v326, %v314
          %vm328 = vcmask 392192
          %v329 = vsel %vm328, %v311, 0.0
          %v330 = vsel %vm328, %v313, 0.0
          %v331 = vadd.f32 %v329, %v330
          %v332 = vsel %vm328, %v315, 0.0
          %v333 = vadd.f32 %v331, %v332
          %334 = vst [vmem:[%s248] sm:$0xff] %v327
          %335 = vst.msk [vmem:[%s248 + $0x8] sm:$0xff] %vm328, %v333
          %v336 = vadd.f32 %v316, %v318
          %v337 = vadd.f32 %v336, %v320
          %v338 = vsel %vm328, %v317, 0.0
          %v339 = vsel %vm328, %v319, 0.0
          %v340 = vadd.f32 %v338, %v339
          %v341 = vsel %vm328, %v321, 0.0
          %v342 = vadd.f32 %v340, %v341
          %343 = vst [vmem:[%s255] sm:$0xff] %v337
          %344 = vst.msk [vmem:[%s255 + $0x8] sm:$0xff] %vm328, %v342
        $region40: #{tpu_custom_call.1} parent=27 // pred_fallthru
          _
        %p345 = scmp.eq.s32.totalorder %s27, 1
        // Predicated region
        $region41: #{tpu_custom_call.1} parent=27 // pred_check
          %p346 = pneg %p345
        $region42: #{tpu_custom_call.1} parent=27 // pred_check_branch
          %348 = sbr.rel (%p346) target = $region44
        $region43: #{tpu_custom_call.1} parent=27 // pred_region
          %v349 = vlaneseq
          %v350 = vshrl.u32 %v349, 7
          %v351 = vadd.s32 %v350, 8
          %v352 = vadd.s32 %v350, 16
          %vm353 = vcmp.lt.s32.totalorder %v350, 11
          %vm354 = vcmp.lt.s32.totalorder %v351, 11
          %vm355 = vcmp.lt.s32.totalorder %v352, 11
          %v356 = vsel %vm353, %v310, 0.0
          %v357 = vsel %vm353, %v311, 0.0
          %v358 = vsel %vm354, %v312, 0.0
          %v359 = vsel %vm354, %v313, 0.0
          %v360 = vsel %vm355, %v314, 0.0
          %v361 = vsel %vm355, %v315, 0.0
          %v362 = vsel %vm353, %v316, 0.0
          %v363 = vsel %vm353, %v317, 0.0
          %v364 = vsel %vm354, %v318, 0.0
          %v365 = vsel %vm354, %v319, 0.0
          %v366 = vsel %vm355, %v320, 0.0
          %v367 = vsel %vm355, %v321, 0.0
          %v368 = vadd.f32 %v356, %v358
          %v369 = vadd.f32 %v368, %v360
          %vm370 = vcmask 392192
          %v371 = vsel %vm370, %v357, 0.0
          %v372 = vsel %vm370, %v359, 0.0
          %v373 = vadd.f32 %v371, %v372
          %v374 = vsel %vm370, %v361, 0.0
          %v375 = vadd.f32 %v373, %v374
          %376 = vst [vmem:[%s248] sm:$0xff] %v369
          %377 = vst.msk [vmem:[%s248 + $0x8] sm:$0xff] %vm370, %v375
          %v378 = vadd.f32 %v362, %v364
          %v379 = vadd.f32 %v378, %v366
          %v380 = vsel %vm370, %v363, 0.0
          %v381 = vsel %vm370, %v365, 0.0
          %v382 = vadd.f32 %v380, %v381
          %v383 = vsel %vm370, %v367, 0.0
          %v384 = vadd.f32 %v382, %v383
          %385 = vst [vmem:[%s255] sm:$0xff] %v379
          %386 = vst.msk [vmem:[%s255 + $0x8] sm:$0xff] %vm370, %v384
        $region44: #{tpu_custom_call.1} parent=27 // pred_fallthru
          _
        %s387 = sand.u32 %s87, 1
        %s388 = scalar_lea.sflag [#allocation4], %s387
        %s389 = sand.u32 %s87, 1
        %s390 = smul.addr %s389, 16
        %s391 = scalar_lea.vmem [#allocation7], %s390
        %s392 = sand.u32 %s113, 1
        %s393 = scalar_lea.sflag [#allocation9], %s392
        %s394 = sand.u32 %s113, 1
        %s395 = smul.addr %s394, 16
        %s396 = scalar_lea.vmem [#allocation8], %s395
        // Predicated region
        $region45: #{tpu_custom_call.1} parent=27 // pred_check
          %p397 = pneg %p97
        $region46: #{tpu_custom_call.1} parent=27 // pred_check_branch
          %399 = sbr.rel (%p397) target = $region48
        $region47: #{tpu_custom_call.1} parent=27 // pred_region
          %s401 = ssub.s32 256, 256
          %402 = vsyncadd %s388, %s401
          %s403 = smul.addr %s27, 2
          %s404 = smul.addr %s403, 128
          %s405 = scalar_lea.hbm %s2, %s404
          %s407 = sshll.u32 %s391, 4
          %s408 = int_to_ptr.vmem [resolvable:$true] %s407
          %410 = dma.vmem_to_hbm [thread:$0]  %s408, 256, %s405, %s388
        $region48: #{tpu_custom_call.1} parent=27 // pred_fallthru
          _
        // Predicated region
        $region49: #{tpu_custom_call.1} parent=27 // pred_check
          %p411 = pneg %p123
        $region50: #{tpu_custom_call.1} parent=27 // pred_check_branch
          %413 = sbr.rel (%p411) target = $region52
        $region51: #{tpu_custom_call.1} parent=27 // pred_region
          %s415 = ssub.s32 256, 256
          %416 = vsyncadd %s393, %s415
          %s417 = smul.addr %s27, 2
          %s418 = smul.addr %s417, 128
          %s419 = scalar_lea.hbm %s3, %s418
          %s421 = sshll.u32 %s396, 4
          %s422 = int_to_ptr.vmem [resolvable:$true] %s421
          %424 = dma.vmem_to_hbm [thread:$0]  %s422, 256, %s419, %s393
        $region52: #{tpu_custom_call.1} parent=27 // pred_fallthru
          _
      $region28: #{tpu_custom_call.1} parent=5 // pred_fallthru
        _
      %p425 = scmp.le.s32.totalorder 2, %s22
      // Predicated region
      $region53: #{tpu_custom_call.1} parent=5 // pred_check
        %p426 = pneg %p425
      $region54: #{tpu_custom_call.1} parent=5 // pred_check_branch
        %428 = sbr.rel (%p426) target = $region56
      $region55: #{tpu_custom_call.1} parent=5 // pred_region
        %s429 = ssub.s32 %s22, 2
        // Predicated region
        $region57: #{tpu_custom_call.1} parent=55 // pred_check
          %p430 = pneg %p103
        $region58: #{tpu_custom_call.1} parent=55 // pred_check_branch
          %432 = sbr.rel (%p430) target = $region60
        $region59: #{tpu_custom_call.1} parent=55 // pred_region
          %s433 = sand.u32 %s88, 1
          %s434 = scalar_lea.sflag [#allocation4], %s433
          %s435 = sand.u32 %s88, 1
          %s436 = smul.addr %s435, 16
          %s437 = scalar_lea.vmem [#allocation7], %s436
          %438 = dma.done %s434, 256
        $region60: #{tpu_custom_call.1} parent=55 // pred_fallthru
          _
        // Predicated region
        $region61: #{tpu_custom_call.1} parent=55 // pred_check
          %p439 = pneg %p129
        $region62: #{tpu_custom_call.1} parent=55 // pred_check_branch
          %441 = sbr.rel (%p439) target = $region64
        $region63: #{tpu_custom_call.1} parent=55 // pred_region
          %s442 = sand.u32 %s114, 1
          %s443 = scalar_lea.sflag [#allocation9], %s442
          %s444 = sand.u32 %s114, 1
          %s445 = smul.addr %s444, 16
          %s446 = scalar_lea.vmem [#allocation8], %s445
          %447 = dma.done %s443, 256
        $region64: #{tpu_custom_call.1} parent=55 // pred_fallthru
          _
      $region56: #{tpu_custom_call.1} parent=5 // pred_fallthru
        _
    $region6: #{tpu_custom_call.1} parent=1 // loop_footer
      %s26 = sadd.s32 1, %s22
    $region7: #{tpu_custom_call.1} parent=1 // loop_footer_branch
      %21 = sbr.rel target = $region3
    $region8: #{tpu_custom_call.1} parent=1 // loop_exit
      _
    %448 = vsyncpa [#allocation3], 1
    %s449 = scalar_lea.sflag [#allocation3], 1
    %450 = vsyncpa %s449, 1
    %451 = vsyncpa [#allocation6], 1
    %s452 = scalar_lea.sflag [#allocation6], 1
    %453 = vsyncpa %s452, 1
    %454 = vsyncpa [#allocation4], 1
    %s455 = scalar_lea.sflag [#allocation4], 1
    %456 = vsyncpa %s455, 1
    %457 = vsyncpa [#allocation9], 1
    %s458 = scalar_lea.sflag [#allocation9], 1
    %459 = vsyncpa %s458, 1

</llo_original>
